<compile_context>
chip_gen: v5e
topology: v5e:2x2
jax: 0.10.0
libtpu: 0.0.40
codegen_flags: <defaults>
</compile_context>

<pallas_src>
import functools

import jax
import jax.numpy as jnp
from jax.experimental import pallas as pl
from jax.experimental.pallas import tpu as pltpu


# ----------------------------- Pallas kernel --------------------------------
def _conv3x3_relu_kernel(xp_ref, wmat_ref, bias_ref, o_ref, *, n_img, h_out):
    # xp_ref   : (N, H+2, (W+2)*C_in)   padded NHWC input, (W,C) folded to lanes
    # wmat_ref : (3, (W+2)*C_in, W*C_out)  banded weights, one slab per ky
    # bias_ref : (1, W*C_out)            bias tiled across W
    # o_ref    : (N, H, W*C_out)         lane-dense output (W*C_out == 128 here)
    for n in range(n_img):                      # static unroll (tiny N)
        acc = jnp.dot(xp_ref[n, pl.ds(0, h_out), :], wmat_ref[0, :, :],
                      preferred_element_type=jnp.float32)
        for ky in range(1, 3):                  # fused "im2col": row-shifted slices
            acc += jnp.dot(xp_ref[n, pl.ds(ky, h_out), :], wmat_ref[ky, :, :],
                           preferred_element_type=jnp.float32)
        acc += bias_ref[...]
        o_ref[n, :, :] = jnp.maximum(acc, 0.0).astype(o_ref.dtype)


def _conv3x3_relu(xp3, wmat, bias_row, *, n_img, h_out):
    """xp3: (N, H+2, (W+2)*C), wmat: (3, (W+2)*C, W*Co), bias_row: (1, W*Co)."""
    _, hp, wpc = xp3.shape
    _, _, wco = wmat.shape

    kernel = functools.partial(_conv3x3_relu_kernel, n_img=n_img, h_out=h_out)

    out_elems = n_img * h_out * wco
    flops = 2 * 3 * n_img * h_out * wpc * wco
    bytes_accessed = 4 * (xp3.size + wmat.size + bias_row.size + out_elems)

    # Whole problem fits comfortably in VMEM -> single grid step.
    # TODO(synk): for large N*H, add a row grid axis marked "parallel"
    # (megacore on v7x) and size the tile for 32 MiB scoped VMEM.
    return pl.pallas_call(
        kernel,
        out_shape=jax.ShapeDtypeStruct((n_img, h_out, wco), jnp.float32),
        grid_spec=pltpu.PrefetchScalarGridSpec(
            num_scalar_prefetch=0,
            grid=(1,),
            in_specs=[
                pl.BlockSpec((n_img, hp, wpc), lambda i: (0, 0, 0)),
                pl.BlockSpec((3, wpc, wco), lambda i: (0, 0, 0)),
                pl.BlockSpec((1, wco), lambda i: (0, 0)),
            ],
            out_specs=pl.BlockSpec((n_img, h_out, wco), lambda i: (0, 0, 0)),
        ),
        compiler_params=pltpu.CompilerParams(
            dimension_semantics=("arbitrary",),
        ),
        cost_estimate=pl.CostEstimate(
            flops=flops, transcendentals=0, bytes_accessed=bytes_accessed),
    )(xp3, wmat, bias_row)


# ------------------------- GetModelIntermediateLayer ------------------------
class GetModelIntermediateLayerPallas:
    """Equivalent of nn.Sequential(Conv2d(4,8,3,pad=1), ReLU()) in Pallas."""

    def __init__(self, weight, bias):
        # weight: (C_out, C_in, kH, kW)  -- PyTorch OIHW convention
        # bias:   (C_out,)
        self.weight = jnp.asarray(weight, jnp.float32)
        self.bias = jnp.asarray(bias, jnp.float32)
        self.c_out, self.c_in, self.kh, self.kw = weight.shape
        assert (self.kh, self.kw) == (3, 3)

    @functools.partial(jax.jit, static_argnums=0)
    def __call__(self, x):
        # x: (N, C_in, H, W)  NCHW, float32
        n, c, h, w = x.shape
        assert c == self.c_in
        co = self.c_out
        wp = w + 2

        # ---- minimal glue: NCHW -> padded NHWC, fold (W, C) into lanes -------
        xh = jnp.transpose(x, (0, 2, 3, 1)).astype(jnp.float32)     # (N,H,W,C)
        xp = jnp.pad(xh, ((0, 0), (1, 1), (1, 1), (0, 0)))          # (N,H+2,W+2,C)
        xp3 = xp.reshape(n, h + 2, wp * c)                          # (N,H+2,(W+2)*C)

        # ---- banded weight matrices (constant-folded by XLA; weights are
        #      concrete constants under this jit) -----------------------------
        # wmat[ky, (wpos+kx)*C + ci, wpos*Co + co] = weight[co, ci, ky, kx]
        p_idx = jnp.arange(wp)[:, None]                 # input column
        w_idx = jnp.arange(w)[None, :]                  # output column
        kx = p_idx - w_idx                              # (wp, w)
        valid = (kx >= 0) & (kx < 3)
        kxc = jnp.clip(kx, 0, 2)
        wk = jnp.transpose(self.weight, (2, 3, 1, 0))   # (ky, kx, C_in, C_out)
        b4 = wk[:, kxc, :, :] * valid[None, :, :, None, None]   # (3,wp,w,C,Co)
        wmat = jnp.transpose(b4, (0, 1, 3, 2, 4)).reshape(3, wp * c, w * co)

        bias_row = jnp.tile(self.bias, w).reshape(1, w * co)

        # ---- hot path in Pallas (fused im2col + matmul + bias + ReLU) --------
        out3 = _conv3x3_relu(xp3, wmat, bias_row, n_img=n, h_out=h)

        # ---- glue: (N,H,W*Co) -> NCHW ---------------------------------------
        return out3.reshape(n, h, w, co).transpose(0, 3, 1, 2)


# --------------------------------- main --------------------------------------
if __name__ == "__main__":
    key = jax.random.PRNGKey(0)
    k_x, k_w, k_b = jax.random.split(key, 3)

    N, C_IN, H, W = 2, 4, 16, 16
    C_OUT = 8

    x = jax.random.normal(k_x, (N, C_IN, H, W), dtype=jnp.float32)
    weight = jax.random.normal(k_w, (C_OUT, C_IN, 3, 3), dtype=jnp.float32) * 0.1
    bias = jax.random.normal(k_b, (C_OUT,), dtype=jnp.float32) * 0.1

    model = GetModelIntermediateLayerPallas(weight, bias)
    y = jax.block_until_ready(model(x))

    # reference check (pure JAX, no torch): conv(NCHW, OIHW, pad=1) + relu
    ref = jax.lax.conv_general_dilated(
        x, weight, window_strides=(1, 1), padding=((1, 1), (1, 1)),
        dimension_numbers=("NCHW", "OIHW", "NCHW"))
    ref = jnp.maximum(ref + bias[None, :, None, None], 0.0)

    assert y.shape == (N, C_OUT, H, W), y.shape
    assert jnp.allclose(y, ref, atol=1e-4, rtol=1e-4), float(jnp.abs(y - ref).max())

    print("KERNEL_OK")
</pallas_src>

<mosaic_0001>
module attributes {stable_mosaic.version = 11 : i64} {
  func.func @_conv3x3_relu_kernel(%arg0: i32, %arg1: memref<2x18x72xf32, #tpu.memory_space<vmem>>, %arg2: memref<3x72x128xf32, #tpu.memory_space<vmem>>, %arg3: memref<1x128xf32, #tpu.memory_space<vmem>>, %arg4: memref<2x16x128xf32, #tpu.memory_space<vmem>>) attributes {dimension_semantics = [#tpu.dimension_semantics<arbitrary>], iteration_bounds = array<i64: 1>, scalar_prefetch = 0 : i64, scratch_operands = 0 : i64, tpu.core_type = #tpu.core_type<tc>, window_params = [{pipeline_mode = #tpu.pipeline_mode<synchronous>, transform_indices = @transform_0, window_bounds = array<i64: 2, 18, 72>}, {pipeline_mode = #tpu.pipeline_mode<synchronous>, transform_indices = @transform_1, window_bounds = array<i64: 3, 72, 128>}, {pipeline_mode = #tpu.pipeline_mode<synchronous>, transform_indices = @transform_2, window_bounds = array<i64: 1, 128>}, {pipeline_mode = #tpu.pipeline_mode<synchronous>, transform_indices = @transform_3, window_bounds = array<i64: 2, 16, 128>}]} {
    %c0 = arith.constant 0 : index
    %c0_0 = arith.constant 0 : index
    %c0_1 = arith.constant 0 : index
    %0 = vector.load %arg1[%c0, %c0_0, %c0_1] : memref<2x18x72xf32, #tpu.memory_space<vmem>>, vector<1x16x72xf32>
    %1 = vector.shape_cast %0 : vector<1x16x72xf32> to vector<16x72xf32>
    %c0_2 = arith.constant 0 : index
    %c0_3 = arith.constant 0 : index
    %c0_4 = arith.constant 0 : index
    %2 = vector.load %arg2[%c0_2, %c0_3, %c0_4] : memref<3x72x128xf32, #tpu.memory_space<vmem>>, vector<1x72x128xf32>
    %3 = vector.shape_cast %2 : vector<1x72x128xf32> to vector<72x128xf32>
    %cst = arith.constant dense<0.000000e+00> : vector<16x128xf32>
    %4 = tpu.matmul %1, %3, %cst {dimension_numbers = #tpu.dot_dimension_numbers<[1], [0], [0], [1], [0, 0, 1, 1], [], []>} : vector<16x72xf32>, vector<72x128xf32>, vector<16x128xf32> -> vector<16x128xf32>
    %c0_5 = arith.constant 0 : index
    %c1 = arith.constant 1 : index
    %c0_6 = arith.constant 0 : index
    %5 = vector.load %arg1[%c0_5, %c1, %c0_6] : memref<2x18x72xf32, #tpu.memory_space<vmem>>, vector<1x16x72xf32>
    %6 = vector.shape_cast %5 : vector<1x16x72xf32> to vector<16x72xf32>
    %c1_7 = arith.constant 1 : index
    %c0_8 = arith.constant 0 : index
    %c0_9 = arith.constant 0 : index
    %7 = vector.load %arg2[%c1_7, %c0_8, %c0_9] : memref<3x72x128xf32, #tpu.memory_space<vmem>>, vector<1x72x128xf32>
    %8 = vector.shape_cast %7 : vector<1x72x128xf32> to vector<72x128xf32>
    %cst_10 = arith.constant dense<0.000000e+00> : vector<16x128xf32>
    %9 = tpu.matmul %6, %8, %cst_10 {dimension_numbers = #tpu.dot_dimension_numbers<[1], [0], [0], [1], [0, 0, 1, 1], [], []>} : vector<16x72xf32>, vector<72x128xf32>, vector<16x128xf32> -> vector<16x128xf32>
    %10 = arith.addf %4, %9 : vector<16x128xf32>
    %c0_11 = arith.constant 0 : index
    %c2 = arith.constant 2 : index
    %c0_12 = arith.constant 0 : index
    %11 = vector.load %arg1[%c0_11, %c2, %c0_12] : memref<2x18x72xf32, #tpu.memory_space<vmem>>, vector<1x16x72xf32>
    %12 = vector.shape_cast %11 : vector<1x16x72xf32> to vector<16x72xf32>
    %c2_13 = arith.constant 2 : index
    %c0_14 = arith.constant 0 : index
    %c0_15 = arith.constant 0 : index
    %13 = vector.load %arg2[%c2_13, %c0_14, %c0_15] : memref<3x72x128xf32, #tpu.memory_space<vmem>>, vector<1x72x128xf32>
    %14 = vector.shape_cast %13 : vector<1x72x128xf32> to vector<72x128xf32>
    %cst_16 = arith.constant dense<0.000000e+00> : vector<16x128xf32>
    %15 = tpu.matmul %12, %14, %cst_16 {dimension_numbers = #tpu.dot_dimension_numbers<[1], [0], [0], [1], [0, 0, 1, 1], [], []>} : vector<16x72xf32>, vector<72x128xf32>, vector<16x128xf32> -> vector<16x128xf32>
    %16 = arith.addf %10, %15 : vector<16x128xf32>
    %c0_17 = arith.constant 0 : index
    %c0_18 = arith.constant 0 : index
    %17 = vector.load %arg3[%c0_17, %c0_18] : memref<1x128xf32, #tpu.memory_space<vmem>>, vector<1x128xf32>
    %18 = vector.broadcast %17 : vector<1x128xf32> to vector<16x128xf32>
    %19 = arith.addf %16, %18 : vector<16x128xf32>
    %cst_19 = arith.constant 0.000000e+00 : f32
    %20 = vector.broadcast %cst_19 : f32 to vector<16x128xf32>
    %21 = arith.maximumf %19, %20 : vector<16x128xf32>
    %c0_20 = arith.constant 0 : index
    %c0_21 = arith.constant 0 : index
    %c0_22 = arith.constant 0 : index
    %22 = vector.load %arg4[%c0_20, %c0_21, %c0_22] : memref<2x16x128xf32, #tpu.memory_space<vmem>>, vector<1x16x128xf32>
    %23 = vector.shape_cast %22 : vector<1x16x128xf32> to vector<16x128xf32>
    %24 = vector.shape_cast %21 : vector<16x128xf32> to vector<1x16x128xf32>
    tpu.vector_store %arg4[%c0_20, %c0_21, %c0_22], %24 {strides = array<i32>} : memref<2x16x128xf32, #tpu.memory_space<vmem>>, vector<1x16x128xf32>,
    %c1_23 = arith.constant 1 : index
    %c0_24 = arith.constant 0 : index
    %c0_25 = arith.constant 0 : index
    %25 = vector.load %arg1[%c1_23, %c0_24, %c0_25] : memref<2x18x72xf32, #tpu.memory_space<vmem>>, vector<1x16x72xf32>
    %26 = vector.shape_cast %25 : vector<1x16x72xf32> to vector<16x72xf32>
    %c0_26 = arith.constant 0 : index
    %c0_27 = arith.constant 0 : index
    %c0_28 = arith.constant 0 : index
    %27 = vector.load %arg2[%c0_26, %c0_27, %c0_28] : memref<3x72x128xf32, #tpu.memory_space<vmem>>, vector<1x72x128xf32>
    %28 = vector.shape_cast %27 : vector<1x72x128xf32> to vector<72x128xf32>
    %cst_29 = arith.constant dense<0.000000e+00> : vector<16x128xf32>
    %29 = tpu.matmul %26, %28, %cst_29 {dimension_numbers = #tpu.dot_dimension_numbers<[1], [0], [0], [1], [0, 0, 1, 1], [], []>} : vector<16x72xf32>, vector<72x128xf32>, vector<16x128xf32> -> vector<16x128xf32>
    %c1_30 = arith.constant 1 : index
    %c1_31 = arith.constant 1 : index
    %c0_32 = arith.constant 0 : index
    %30 = vector.load %arg1[%c1_30, %c1_31, %c0_32] : memref<2x18x72xf32, #tpu.memory_space<vmem>>, vector<1x16x72xf32>
    %31 = vector.shape_cast %30 : vector<1x16x72xf32> to vector<16x72xf32>
    %c1_33 = arith.constant 1 : index
    %c0_34 = arith.constant 0 : index
    %c0_35 = arith.constant 0 : index
    %32 = vector.load %arg2[%c1_33, %c0_34, %c0_35] : memref<3x72x128xf32, #tpu.memory_space<vmem>>, vector<1x72x128xf32>
    %33 = vector.shape_cast %32 : vector<1x72x128xf32> to vector<72x128xf32>
    %cst_36 = arith.constant dense<0.000000e+00> : vector<16x128xf32>
    %34 = tpu.matmul %31, %33, %cst_36 {dimension_numbers = #tpu.dot_dimension_numbers<[1], [0], [0], [1], [0, 0, 1, 1], [], []>} : vector<16x72xf32>, vector<72x128xf32>, vector<16x128xf32> -> vector<16x128xf32>
    %35 = arith.addf %29, %34 : vector<16x128xf32>
    %c1_37 = arith.constant 1 : index
    %c2_38 = arith.constant 2 : index
    %c0_39 = arith.constant 0 : index
    %36 = vector.load %arg1[%c1_37, %c2_38, %c0_39] : memref<2x18x72xf32, #tpu.memory_space<vmem>>, vector<1x16x72xf32>
    %37 = vector.shape_cast %36 : vector<1x16x72xf32> to vector<16x72xf32>
    %c2_40 = arith.constant 2 : index
    %c0_41 = arith.constant 0 : index
    %c0_42 = arith.constant 0 : index
    %38 = vector.load %arg2[%c2_40, %c0_41, %c0_42] : memref<3x72x128xf32, #tpu.memory_space<vmem>>, vector<1x72x128xf32>
    %39 = vector.shape_cast %38 : vector<1x72x128xf32> to vector<72x128xf32>
    %cst_43 = arith.constant dense<0.000000e+00> : vector<16x128xf32>
    %40 = tpu.matmul %37, %39, %cst_43 {dimension_numbers = #tpu.dot_dimension_numbers<[1], [0], [0], [1], [0, 0, 1, 1], [], []>} : vector<16x72xf32>, vector<72x128xf32>, vector<16x128xf32> -> vector<16x128xf32>
    %41 = arith.addf %35, %40 : vector<16x128xf32>
    %c0_44 = arith.constant 0 : index
    %c0_45 = arith.constant 0 : index
    %42 = vector.load %arg3[%c0_44, %c0_45] : memref<1x128xf32, #tpu.memory_space<vmem>>, vector<1x128xf32>
    %43 = vector.broadcast %42 : vector<1x128xf32> to vector<16x128xf32>
    %44 = arith.addf %41, %43 : vector<16x128xf32>
    %cst_46 = arith.constant 0.000000e+00 : f32
    %45 = vector.broadcast %cst_46 : f32 to vector<16x128xf32>
    %46 = arith.maximumf %44, %45 : vector<16x128xf32>
    %c1_47 = arith.constant 1 : index
    %c0_48 = arith.constant 0 : index
    %c0_49 = arith.constant 0 : index
    %47 = vector.load %arg4[%c1_47, %c0_48, %c0_49] : memref<2x16x128xf32, #tpu.memory_space<vmem>>, vector<1x16x128xf32>
    %48 = vector.shape_cast %47 : vector<1x16x128xf32> to vector<16x128xf32>
    %49 = vector.shape_cast %46 : vector<16x128xf32> to vector<1x16x128xf32>
    tpu.vector_store %arg4[%c1_47, %c0_48, %c0_49], %49 {strides = array<i32>} : memref<2x16x128xf32, #tpu.memory_space<vmem>>, vector<1x16x128xf32>,
    return
  }
  func.func @transform_0(%arg0: i32) -> (i32, i32, i32) {
    %c0_i32 = arith.constant 0 : i32
    %c0_i32_0 = arith.constant 0 : i32
    %c0_i32_1 = arith.constant 0 : i32
    %c0_i32_2 = arith.constant 0 : i32
    return %c0_i32, %c0_i32_0, %c0_i32_1 : i32, i32, i32
  }
  func.func @transform_1(%arg0: i32) -> (i32, i32, i32) {
    %c0_i32 = arith.constant 0 : i32
    %c0_i32_0 = arith.constant 0 : i32
    %c0_i32_1 = arith.constant 0 : i32
    %c0_i32_2 = arith.constant 0 : i32
    return %c0_i32, %c0_i32_0, %c0_i32_1 : i32, i32, i32
  }
  func.func @transform_2(%arg0: i32) -> (i32, i32) {
    %c0_i32 = arith.constant 0 : i32
    %c0_i32_0 = arith.constant 0 : i32
    %c0_i32_1 = arith.constant 0 : i32
    return %c0_i32, %c0_i32_0 : i32, i32
  }
  func.func @transform_3(%arg0: i32) -> (i32, i32, i32) {
    %c0_i32 = arith.constant 0 : i32
    %c0_i32_0 = arith.constant 0 : i32
    %c0_i32_1 = arith.constant 0 : i32
    %c0_i32_2 = arith.constant 0 : i32
    return %c0_i32, %c0_i32_0, %c0_i32_1 : i32, i32, i32
  }
}

</mosaic_0001>

<llo_original>
// kernel: tile.6
$region0: #{tile.6}
  #allocation0 [shape = 's32[1]{0}', space=sflag, size = 0x4, scoped, tag = 'scoped memory for tile.6']
  %s0 = inlined_call_operand.vmem [shape: f32[8], index: 0, kind: input, shape index: {}]
  %s1 = inlined_call_operand.vmem [shape: f32[16,8], index: 1, kind: output, shape index: {}]
  // Predicated region
  $region2: #{tile.6} parent=0 // pred_check
    _
  $region3: #{tile.6} parent=0 // pred_check_branch
    %3 = sbr.rel (0) target = $region5
  $region4: #{tile.6} parent=0 // pred_region
    _
  $region5: #{tile.6} parent=0 // pred_fallthru
    _
  %v4 = vld [vmem:[%s0] ss:$0 sm:$0xff]
  %5 = vst [vmem:[%s1] sm:$0xff] %v4
  %s6 = scalar_lea.vmem %s1, 8
  %7 = vst [vmem:[%s6] sm:$0xff] %v4

// kernel: tile.7
$region0: #{tile.7}
  %s0 = inlined_call_operand.vmem [shape: f32[16,8], index: 0, kind: input, shape index: {}]
  %s1 = inlined_call_operand.vmem [shape: f32[1,128], index: 1, kind: output, shape index: {}]
  $region1: #{tile.7} parent=0
    #allocation0 [shape = 'u8[4096]{0}', space=vmem, size = 0x1000, scoped, tag = 'scoped mem for output reshape']
    %v2 = vld [vmem:[%s0] sm:$0x1]
    %vm3 = vcmask 64512
    %4 = vst.msk [vmem:[#allocation0] sm:$0x1] %vm3, %v2
    %s5 = scalar_lea.vmem %s0, 15
    %v6 = vld [vmem:[%s5] sm:$0x1]
    %7 = vrot.lane.b32.xlu0 %v6, 120
    %v8 = vpop.permute.xlu0 %7
    %vm9 = vcmask 1048512
    %10 = vst.msk [vmem:[#allocation0] sm:$0x1] %vm9, %v8
    %s11 = scalar_lea.vmem %s0, 14
    %v12 = vld [vmem:[%s11] sm:$0x1]
    %13 = vrot.lane.b32.xlu0 %v12, 112
    %v14 = vpop.permute.xlu0 %13
    %vm15 = vcmask 982912
    %16 = vst.msk [vmem:[#allocation0] sm:$0x1] %vm15, %v14
    %s17 = scalar_lea.vmem %s0, 13
    %v18 = vld [vmem:[%s17] sm:$0x1]
    %19 = vrot.lane.b32.xlu0 %v18, 104
    %v20 = vpop.permute.xlu0 %19
    %vm21 = vcmask 917312
    %22 = vst.msk [vmem:[#allocation0] sm:$0x1] %vm21, %v20
    %s23 = scalar_lea.vmem %s0, 12
    %v24 = vld [vmem:[%s23] sm:$0x1]
    %25 = vrot.lane.b32.xlu0 %v24, 96
    %v26 = vpop.permute.xlu0 %25
    %vm27 = vcmask 851712
    %28 = vst.msk [vmem:[#allocation0] sm:$0x1] %vm27, %v26
    %s29 = scalar_lea.vmem %s0, 11
    %v30 = vld [vmem:[%s29] sm:$0x1]
    %31 = vrot.lane.b32.xlu0 %v30, 88
    %v32 = vpop.permute.xlu0 %31
    %vm33 = vcmask 786112
    %34 = vst.msk [vmem:[#allocation0] sm:$0x1] %vm33, %v32
    %s35 = scalar_lea.vmem %s0, 10
    %v36 = vld [vmem:[%s35] sm:$0x1]
    %37 = vrot.lane.b32.xlu0 %v36, 80
    %v38 = vpop.permute.xlu0 %37
    %vm39 = vcmask 720512
    %40 = vst.msk [vmem:[#allocation0] sm:$0x1] %vm39, %v38
    %s41 = scalar_lea.vmem %s0, 9
    %v42 = vld [vmem:[%s41] sm:$0x1]
    %43 = vrot.lane.b32.xlu0 %v42, 72
    %v44 = vpop.permute.xlu0 %43
    %vm45 = vcmask 654912
    %46 = vst.msk [vmem:[#allocation0] sm:$0x1] %vm45, %v44
    %s47 = scalar_lea.vmem %s0, 8
    %v48 = vld [vmem:[%s47] sm:$0x1]
    %49 = vrot.lane.b32.xlu0 %v48, 64
    %v50 = vpop.permute.xlu0 %49
    %vm51 = vcmask 589312
    %52 = vst.msk [vmem:[#allocation0] sm:$0x1] %vm51, %v50
    %s53 = scalar_lea.vmem %s0, 7
    %v54 = vld [vmem:[%s53] sm:$0x1]
    %55 = vrot.lane.b32.xlu0 %v54, 56
    %v56 = vpop.permute.xlu0 %55
    %vm57 = vcmask 523712
    %58 = vst.msk [vmem:[#allocation0] sm:$0x1] %vm57, %v56
    %s59 = scalar_lea.vmem %s0, 6
    %v60 = vld [vmem:[%s59] sm:$0x1]
    %61 = vrot.lane.b32.xlu0 %v60, 48
    %v62 = vpop.permute.xlu0 %61
    %vm63 = vcmask 458112
    %64 = vst.msk [vmem:[#allocation0] sm:$0x1] %vm63, %v62
    %s65 = scalar_lea.vmem %s0, 5
    %v66 = vld [vmem:[%s65] sm:$0x1]
    %67 = vrot.lane.b32.xlu0 %v66, 40
    %v68 = vpop.permute.xlu0 %67
    %vm69 = vcmask 392512
    %70 = vst.msk [vmem:[#allocation0] sm:$0x1] %vm69, %v68
    %s71 = scalar_lea.vmem %s0, 4
    %v72 = vld [vmem:[%s71] sm:$0x1]
    %73 = vrot.lane.b32.xlu0 %v72, 32
    %v74 = vpop.permute.xlu0 %73
    %vm75 = vcmask 326912
    %76 = vst.msk [vmem:[#allocation0] sm:$0x1] %vm75, %v74
    %s77 = scalar_lea.vmem %s0, 3
    %v78 = vld [vmem:[%s77] sm:$0x1]
    %79 = vrot.lane.b32.xlu0 %v78, 24
    %v80 = vpop.permute.xlu0 %79
    %vm81 = vcmask 261312
    %82 = vst.msk [vmem:[#allocation0] sm:$0x1] %vm81, %v80
    %s83 = scalar_lea.vmem %s0, 2
    %v84 = vld [vmem:[%s83] sm:$0x1]
    %85 = vrot.lane.b32.xlu0 %v84, 16
    %v86 = vpop.permute.xlu0 %85
    %vm87 = vcmask 195712
    %88 = vst.msk [vmem:[#allocation0] sm:$0x1] %vm87, %v86
    %s89 = scalar_lea.vmem %s0, 1
    %v90 = vld [vmem:[%s89] sm:$0x1]
    %91 = vrot.lane.b32.xlu0 %v90, 8
    %v92 = vpop.permute.xlu0 %91
    %vm93 = vcmask 130112
    %94 = vst.msk [vmem:[#allocation0] sm:$0x1] %vm93, %v92
    %s96 = ssub.s32 2, 1
    %v97 = vld [vmem:[#allocation0] sm:%s96]
    %s99 = ssub.s32 2, 1
    %100 = vst [vmem:[%s1] sm:%s99] %v97

// kernel: a_call__.1
$region0: #{a_call__.1}
  #allocation0 [shape = 'u32[]', space=smem, size = 0x4, offset = 0x4, fixed_abs, tag = 'smem constant byte address 0x4 - core index']
  #allocation1 [shape = 'u32[72,128]{1,0:T(1,128)}', space=vmem, size = 0x9000, scoped, tag = 'internal scratch']
  %s0 = inlined_call_operand.vmem [shape: f32[2,18,72], index: 0, kind: input, shape index: {}]
  %s1 = inlined_call_operand.vmem [shape: f32[3,72,128], index: 1, kind: input, shape index: {}]
  %s2 = inlined_call_operand.vmem [shape: f32[1,128], index: 2, kind: input, shape index: {}]
  %s3 = inlined_call_operand.vmem [shape: f32[2,16,128], index: 3, kind: output, shape index: {}]
  %s4 = sld [smem:[#allocation0]]
  $region22: #{a_call__.1} parent=0
    _
  %s6 = ssub.s32 1, %s4
  %s7 = scalar_select 0, %s6, %s4
  // Predicated region
  $region2: #{a_call__.1} parent=0 // pred_check
    _
  $region3: #{a_call__.1} parent=0 // pred_check_branch
    %9 = sbr.rel (0) target = $region5
  $region4: #{a_call__.1} parent=0 // pred_region
    _
  $region5: #{a_call__.1} parent=0 // pred_fallthru
    _
  // Predicated region
  $region6: #{a_call__.1} parent=0 // pred_check
    _
  $region7: #{a_call__.1} parent=0 // pred_check_branch
    %11 = sbr.rel (0) target = $region9
  $region8: #{a_call__.1} parent=0 // pred_region
    _
  $region9: #{a_call__.1} parent=0 // pred_fallthru
    _
  // Predicated region
  $region10: #{a_call__.1} parent=0 // pred_check
    _
  $region11: #{a_call__.1} parent=0 // pred_check_branch
    %13 = sbr.rel (0) target = $region13
  $region12: #{a_call__.1} parent=0 // pred_region
    _
  $region13: #{a_call__.1} parent=0 // pred_fallthru
    _
  %v14 = vld [vmem:[%s0] sm:$0xff]
  %v15 = vld [vmem:[%s0 + $0x8] sm:$0xff]
  %v16 = vld [vmem:[%s1] sm:$0xff]
  %v17 = vld [vmem:[%s1 + $0x8] sm:$0xff]
  %v18 = vld [vmem:[%s1 + $0x10] sm:$0xff]
  %v19 = vld [vmem:[%s1 + $0x18] sm:$0xff]
  %v20 = vld [vmem:[%s1 + $0x20] sm:$0xff]
  %v21 = vld [vmem:[%s1 + $0x28] sm:$0xff]
  %v22 = vld [vmem:[%s1 + $0x30] sm:$0xff]
  %v23 = vld [vmem:[%s1 + $0x38] sm:$0xff]
  %v24 = vld [vmem:[%s1 + $0x40] sm:$0xff]
  %v25 = vld [vmem:[%s0 + $0x1] sm:$0xff]
  %v26 = vld [vmem:[%s0 + $0x9] sm:$0xff]
  %s27 = scalar_lea.vmem %s1, 72
  %v28 = vld [vmem:[%s27] sm:$0xff]
  %v29 = vld [vmem:[%s27 + $0x8] sm:$0xff]
  %v30 = vld [vmem:[%s27 + $0x10] sm:$0xff]
  %v31 = vld [vmem:[%s27 + $0x18] sm:$0xff]
  %v32 = vld [vmem:[%s27 + $0x20] sm:$0xff]
  %v33 = vld [vmem:[%s27 + $0x28] sm:$0xff]
  %v34 = vld [vmem:[%s27 + $0x30] sm:$0xff]
  %v35 = vld [vmem:[%s27 + $0x38] sm:$0xff]
  %v36 = vld [vmem:[%s27 + $0x40] sm:$0xff]
  %vm37 = vcmask 588800
  %v39 = vsel %vm37, %v25, 0
  %v42 = vsel %vm37, %v26, 0
  %44 = vmatpush.msra.mxu0 0.0
  %45 = vmatpush.msra.mxu0 0.0
  %46 = vmatpush.msra.mxu0 0.0
  %47 = vmatpush.msra.mxu0 0.0
  %48 = vmatpush.msra.mxu0 0.0
  %49 = vmatpush.msra.mxu0 0.0
  %50 = vmatpush.msra.mxu0 0.0
  %51 = vmatpush.msra.mxu0 %v36
  %52 = vmatpush.msra.mxu0 %v35
  %53 = vmatpush.msra.mxu0 %v34
  %54 = vmatpush.msra.mxu0 %v33
  %55 = vmatpush.msra.mxu0 %v32
  %56 = vmatpush.msra.mxu0 %v31
  %57 = vmatpush.msra.mxu0 %v30
  %58 = vmatpush.msra.mxu0 %v29
  %59 = vmatpush.msra.mxu0 %v28
  %60 = vmatmul.f32.gmra.mxu0 %v39
  %v61 = vpop.f32.mrf.mxu0
  %v62 = vadd.f32 0.0, %v61
  %63 = vmatmul.f32.gmra.mxu0 %v42
  %v64 = vpop.f32.mrf.mxu0
  %v65 = vadd.f32 0.0, %v64
  %66 = vdwg.mxu0
  %v68 = vsel %vm37, %v14, 0
  %v71 = vsel %vm37, %v15, 0
  %73 = vmatpush.msra.mxu0 0.0
  %74 = vmatpush.msra.mxu0 0.0
  %75 = vmatpush.msra.mxu0 0.0
  %76 = vmatpush.msra.mxu0 0.0
  %77 = vmatpush.msra.mxu0 0.0
  %78 = vmatpush.msra.mxu0 0.0
  %79 = vmatpush.msra.mxu0 0.0
  %80 = vmatpush.msra.mxu0 %v24
  %81 = vmatpush.msra.mxu0 %v23
  %82 = vmatpush.msra.mxu0 %v22
  %83 = vmatpush.msra.mxu0 %v21
  %84 = vmatpush.msra.mxu0 %v20
  %85 = vmatpush.msra.mxu0 %v19
  %86 = vmatpush.msra.mxu0 %v18
  %87 = vmatpush.msra.mxu0 %v17
  %88 = vmatpush.msra.mxu0 %v16
  %89 = vmatmul.f32.gmra.mxu0 %v68
  %v90 = vpop.f32.mrf.mxu0
  %v91 = vadd.f32 %v62, %v90
  %92 = vmatmul.f32.gmra.mxu0 %v71
  %v93 = vpop.f32.mrf.mxu0
  %v94 = vadd.f32 %v65, %v93
  %95 = vdwg.mxu0
  %v96 = vld [vmem:[%s0 + $0x2] sm:$0xff]
  %v97 = vld [vmem:[%s0 + $0xa] sm:$0xff]
  %s98 = scalar_lea.vmem %s1, 144
  %v99 = vld [vmem:[%s98] sm:$0xff]
  %v100 = vld [vmem:[%s98 + $0x8] sm:$0xff]
  %v101 = vld [vmem:[%s98 + $0x10] sm:$0xff]
  %v102 = vld [vmem:[%s98 + $0x18] sm:$0xff]
  %v103 = vld [vmem:[%s98 + $0x20] sm:$0xff]
  %v104 = vld [vmem:[%s98 + $0x28] sm:$0xff]
  %v105 = vld [vmem:[%s98 + $0x30] sm:$0xff]
  %v106 = vld [vmem:[%s98 + $0x38] sm:$0xff]
  %v107 = vld [vmem:[%s98 + $0x40] sm:$0xff]
  %v109 = vsel %vm37, %v96, 0
  %v112 = vsel %vm37, %v97, 0
  %114 = vmatpush.msra.mxu0 0.0
  %115 = vmatpush.msra.mxu0 0.0
  %116 = vmatpush.msra.mxu0 0.0
  %117 = vmatpush.msra.mxu0 0.0
  %118 = vmatpush.msra.mxu0 0.0
  %119 = vmatpush.msra.mxu0 0.0
  %120 = vmatpush.msra.mxu0 0.0
  %121 = vmatpush.msra.mxu0 %v107
  %122 = vmatpush.msra.mxu0 %v106
  %123 = vmatpush.msra.mxu0 %v105
  %124 = vmatpush.msra.mxu0 %v104
  %125 = vmatpush.msra.mxu0 %v103
  %126 = vmatpush.msra.mxu0 %v102
  %127 = vmatpush.msra.mxu0 %v101
  %128 = vmatpush.msra.mxu0 %v100
  %129 = vmatpush.msra.mxu0 %v99
  %130 = vmatmul.f32.gmra.mxu0 %v109
  %v131 = vpop.f32.mrf.mxu0
  %v132 = vadd.f32 0.0, %v131
  %133 = vmatmul.f32.gmra.mxu0 %v112
  %v134 = vpop.f32.mrf.mxu0
  %v135 = vadd.f32 0.0, %v134
  %136 = vdwg.mxu0
  %v137 = vadd.f32 %v91, %v132
  %v138 = vadd.f32 %v94, %v135
  %v139 = vld [vmem:[%s2] sm:$0x1]
  %v141 = vperm.slane %v139, 0
  %v143 = vadd.f32 %v137, %v141
  %v144 = vadd.f32 %v138, %v141
  %v145 = vmax.f32 %v143, 0.0
  %v146 = vmax.f32 %v144, 0.0
  %147 = vst [vmem:[%s3] sm:$0xff] %v145
  %148 = vst [vmem:[%s3 + $0x8] sm:$0xff] %v146
  %s149 = scalar_lea.vmem %s0, 24
  %v150 = vld [vmem:[%s149] sm:$0xff]
  %v151 = vld [vmem:[%s149 + $0x8] sm:$0xff]
  %v152 = vld [vmem:[%s1] sm:$0xff]
  %v153 = vld [vmem:[%s1 + $0x8] sm:$0xff]
  %v154 = vld [vmem:[%s1 + $0x10] sm:$0xff]
  %v155 = vld [vmem:[%s1 + $0x18] sm:$0xff]
  %v156 = vld [vmem:[%s1 + $0x20] sm:$0xff]
  %v157 = vld [vmem:[%s1 + $0x28] sm:$0xff]
  %v158 = vld [vmem:[%s1 + $0x30] sm:$0xff]
  %v159 = vld [vmem:[%s1 + $0x38] sm:$0xff]
  %v160 = vld [vmem:[%s1 + $0x40] sm:$0xff]
  %v161 = vld [vmem:[%s149 + $0x1] sm:$0xff]
  %v162 = vld [vmem:[%s149 + $0x9] sm:$0xff]
  %v163 = vld [vmem:[%s27] sm:$0xff]
  %v164 = vld [vmem:[%s27 + $0x8] sm:$0xff]
  %v165 = vld [vmem:[%s27 + $0x10] sm:$0xff]
  %v166 = vld [vmem:[%s27 + $0x18] sm:$0xff]
  %v167 = vld [vmem:[%s27 + $0x20] sm:$0xff]
  %v168 = vld [vmem:[%s27 + $0x28] sm:$0xff]
  %v169 = vld [vmem:[%s27 + $0x30] sm:$0xff]
  %v170 = vld [vmem:[%s27 + $0x38] sm:$0xff]
  %v171 = vld [vmem:[%s27 + $0x40] sm:$0xff]
  %v173 = vsel %vm37, %v161, 0
  %v176 = vsel %vm37, %v162, 0
  %178 = vmatpush.msra.mxu0 0.0
  %179 = vmatpush.msra.mxu0 0.0
  %180 = vmatpush.msra.mxu0 0.0
  %181 = vmatpush.msra.mxu0 0.0
  %182 = vmatpush.msra.mxu0 0.0
  %183 = vmatpush.msra.mxu0 0.0
  %184 = vmatpush.msra.mxu0 0.0
  %185 = vmatpush.msra.mxu0 %v171
  %186 = vmatpush.msra.mxu0 %v170
  %187 = vmatpush.msra.mxu0 %v169
  %188 = vmatpush.msra.mxu0 %v168
  %189 = vmatpush.msra.mxu0 %v167
  %190 = vmatpush.msra.mxu0 %v166
  %191 = vmatpush.msra.mxu0 %v165
  %192 = vmatpush.msra.mxu0 %v164
  %193 = vmatpush.msra.mxu0 %v163
  %194 = vmatmul.f32.gmra.mxu0 %v173
  %v195 = vpop.f32.mrf.mxu0
  %v196 = vadd.f32 0.0, %v195
  %197 = vmatmul.f32.gmra.mxu0 %v176
  %v198 = vpop.f32.mrf.mxu0
  %v199 = vadd.f32 0.0, %v198
  %200 = vdwg.mxu0
  %v202 = vsel %vm37, %v150, 0
  %v205 = vsel %vm37, %v151, 0
  %207 = vmatpush.msra.mxu0 0.0
  %208 = vmatpush.msra.mxu0 0.0
  %209 = vmatpush.msra.mxu0 0.0
  %210 = vmatpush.msra.mxu0 0.0
  %211 = vmatpush.msra.mxu0 0.0
  %212 = vmatpush.msra.mxu0 0.0
  %213 = vmatpush.msra.mxu0 0.0
  %214 = vmatpush.msra.mxu0 %v160
  %215 = vmatpush.msra.mxu0 %v159
  %216 = vmatpush.msra.mxu0 %v158
  %217 = vmatpush.msra.mxu0 %v157
  %218 = vmatpush.msra.mxu0 %v156
  %219 = vmatpush.msra.mxu0 %v155
  %220 = vmatpush.msra.mxu0 %v154
  %221 = vmatpush.msra.mxu0 %v153
  %222 = vmatpush.msra.mxu0 %v152
  %223 = vmatmul.f32.gmra.mxu0 %v202
  %v224 = vpop.f32.mrf.mxu0
  %v225 = vadd.f32 %v196, %v224
  %226 = vmatmul.f32.gmra.mxu0 %v205
  %v227 = vpop.f32.mrf.mxu0
  %v228 = vadd.f32 %v199, %v227
  %229 = vdwg.mxu0
  %v230 = vld [vmem:[%s149 + $0x2] sm:$0xff]
  %v231 = vld [vmem:[%s149 + $0xa] sm:$0xff]
  %v232 = vld [vmem:[%s98] sm:$0xff]
  %v233 = vld [vmem:[%s98 + $0x8] sm:$0xff]
  %v234 = vld [vmem:[%s98 + $0x10] sm:$0xff]
  %v235 = vld [vmem:[%s98 + $0x18] sm:$0xff]
  %v236 = vld [vmem:[%s98 + $0x20] sm:$0xff]
  %v237 = vld [vmem:[%s98 + $0x28] sm:$0xff]
  %v238 = vld [vmem:[%s98 + $0x30] sm:$0xff]
  %v239 = vld [vmem:[%s98 + $0x38] sm:$0xff]
  %v240 = vld [vmem:[%s98 + $0x40] sm:$0xff]
  %v242 = vsel %vm37, %v230, 0
  %v245 = vsel %vm37, %v231, 0
  %247 = vmatpush.msra.mxu0 0.0
  %248 = vmatpush.msra.mxu0 0.0
  %249 = vmatpush.msra.mxu0 0.0
  %250 = vmatpush.msra.mxu0 0.0
  %251 = vmatpush.msra.mxu0 0.0
  %252 = vmatpush.msra.mxu0 0.0
  %253 = vmatpush.msra.mxu0 0.0
  %254 = vmatpush.msra.mxu0 %v240
  %255 = vmatpush.msra.mxu0 %v239
  %256 = vmatpush.msra.mxu0 %v238
  %257 = vmatpush.msra.mxu0 %v237
  %258 = vmatpush.msra.mxu0 %v236
  %259 = vmatpush.msra.mxu0 %v235
  %260 = vmatpush.msra.mxu0 %v234
  %261 = vmatpush.msra.mxu0 %v233
  %262 = vmatpush.msra.mxu0 %v232
  %263 = vmatmul.f32.gmra.mxu0 %v242
  %v264 = vpop.f32.mrf.mxu0
  %v265 = vadd.f32 0.0, %v264
  %266 = vmatmul.f32.gmra.mxu0 %v245
  %v267 = vpop.f32.mrf.mxu0
  %v268 = vadd.f32 0.0, %v267
  %269 = vdwg.mxu0
  %v270 = vadd.f32 %v225, %v265
  %v271 = vadd.f32 %v228, %v268
  %v272 = vld [vmem:[%s2] sm:$0x1]
  %v274 = vperm.slane %v272, 0
  %v276 = vadd.f32 %v270, %v274
  %v277 = vadd.f32 %v271, %v274
  %v278 = vmax.f32 %v276, 0.0
  %v279 = vmax.f32 %v277, 0.0
  %s280 = scalar_lea.vmem %s3, 16
  %281 = vst [vmem:[%s280] sm:$0xff] %v278
  %282 = vst [vmem:[%s280 + $0x8] sm:$0xff] %v279
  // Predicated region
  $region14: #{a_call__.1} parent=0 // pred_check
    _
  $region15: #{a_call__.1} parent=0 // pred_check_branch
    %284 = sbr.rel (0) target = $region17
  $region16: #{a_call__.1} parent=0 // pred_region
    _
  $region17: #{a_call__.1} parent=0 // pred_fallthru
    _
  // Predicated region
  $region18: #{a_call__.1} parent=0 // pred_check
    _
  $region19: #{a_call__.1} parent=0 // pred_check_branch
    %286 = sbr.rel (0) target = $region21
  $region20: #{a_call__.1} parent=0 // pred_region
    _
  $region21: #{a_call__.1} parent=0 // pred_fallthru
    _

</llo_original>
